<compile_context>
chip_gen: v7x
topology: tpu7x:2x2x1
jax: 0.10.0
libtpu: 0.0.40
codegen_flags: <defaults>
</compile_context>

<pallas_src>
import jax
import jax.numpy as jnp
from jax.experimental import pallas as pl
from jax.experimental.pallas import tpu as pltpu


def _reduce_state_kernel(h_ref, c_ref, w_ref, bh_ref, bc_ref,
                         oh_ref, oc_ref, x_sc):
    # h_ref, c_ref : (2, B, H) f32
    # w_ref        : (2H, 2H)  bf16   = [Wh.T | Wc.T]
    # bh_ref, bc_ref: (1, H)   f32
    # oh_ref, oc_ref: (1, B, H) f32
    # x_sc         : (2B, 2H)  f32 scratch (M-stacked activations)
    B = oh_ref.shape[1]
    H = oh_ref.shape[2]

    # Build X = [[h0|h1]; [c0|c1]] with four tile-aligned stores (no concat /
    # vreg-copy temporary).
    x_sc[:B, :H] = h_ref[0]
    x_sc[:B, H:] = h_ref[1]
    x_sc[B:, :H] = c_ref[0]
    x_sc[B:, H:] = c_ref[1]

    # One dense bf16 MXU matmul covers both the reduce_h and reduce_c linears;
    # accumulate in f32.
    y = jnp.dot(x_sc[...].astype(jnp.bfloat16), w_ref[...],
                preferred_element_type=jnp.float32)          # (2B, 2H) f32

    # Bias add + ReLU in f32 (v5e has no bf16 VPU); each slice is exactly one
    # (8,128) f32 tile, each output store is lane-dense and unmasked.
    oh_ref[0] = jnp.maximum(y[:B, :H] + bh_ref[...], 0.0)
    oc_ref[0] = jnp.maximum(y[B:, H:] + bc_ref[...], 0.0)


def prepare_reduce_state_params(wh, bh, wc, bc):
    """One-time parameter packing (hoisted out of the per-step path).

    wh, wc: (H, 2H) PyTorch-layout Linear weights.  bh, bc: (H,).
    Returns a DENSE packed weight [Wh.T | Wc.T] of shape (2H, 2H) in bf16
    (halves the dominant weight DMA; f32 accumulation keeps accuracy) and the
    two biases as (1, H) f32 rows.
    """
    H = wh.shape[0]
    w_packed = jnp.concatenate([wh.T, wc.T], axis=1).astype(jnp.bfloat16)  # (2H, 2H)
    bh_p = bh.reshape(1, H).astype(jnp.float32)
    bc_p = bc.reshape(1, H).astype(jnp.float32)
    return w_packed, bh_p, bc_p


def reduce_state_pallas(h, c, w_packed, bh_p, bc_p):
    """h, c: (2, B, H) float32 in native LSTM-state layout.

    Returns (oh, oc), each (1, B, H) float32, matching the PyTorch module.
    """
    n_dir, B, H = h.shape
    assert n_dir == 2
    assert w_packed.shape == (2 * H, 2 * H)
    assert bh_p.shape == (1, H) and bc_p.shape == (1, H)

    # Everything fits in VMEM with huge headroom -> single block, no grid.
    vmem = pl.BlockSpec(memory_space=pltpu.MemorySpace.VMEM)
    oh, oc = pl.pallas_call(
        _reduce_state_kernel,
        out_shape=(jax.ShapeDtypeStruct((1, B, H), jnp.float32),
                   jax.ShapeDtypeStruct((1, B, H), jnp.float32)),
        in_specs=[vmem, vmem, vmem, vmem, vmem],
        out_specs=(vmem, vmem),
        scratch_shapes=[pltpu.VMEM((2 * B, 2 * H), jnp.float32)],
    )(h, c, w_packed, bh_p, bc_p)
    return oh, oc


def reduce_state_reference(h, c, wh, bh, wc, bc):
    """Pure-JAX f32 reference of the PyTorch forward."""
    B = h.shape[1]
    H = wh.shape[0]
    h_in = jnp.transpose(h, (1, 0, 2)).reshape(B, 2 * H)
    c_in = jnp.transpose(c, (1, 0, 2)).reshape(B, 2 * H)
    oh = jax.nn.relu(h_in @ wh.T + bh)
    oc = jax.nn.relu(c_in @ wc.T + bc)
    return oh[None], oc[None]


if __name__ == "__main__":
    hidden_dim = 128   # module default; H=128 keeps every load/store lane-dense
    batch = 8          # (8,128) f32 tiles -> unmasked sublane-dense stores

    key = jax.random.PRNGKey(0)
    k_h, k_c, k_wh, k_bh, k_wc, k_bc = jax.random.split(key, 6)

    # Bidirectional LSTM state: (num_directions=2, batch, hidden_dim)
    h = jax.random.normal(k_h, (2, batch, hidden_dim), dtype=jnp.float32)
    c = jax.random.normal(k_c, (2, batch, hidden_dim), dtype=jnp.float32)

    # Deterministic parameter init matching init_linear_wt (normal, std=1e-4).
    wh = 1e-4 * jax.random.normal(k_wh, (hidden_dim, 2 * hidden_dim), dtype=jnp.float32)
    bh = 1e-4 * jax.random.normal(k_bh, (hidden_dim,), dtype=jnp.float32)
    wc = 1e-4 * jax.random.normal(k_wc, (hidden_dim, 2 * hidden_dim), dtype=jnp.float32)
    bc = 1e-4 * jax.random.normal(k_bc, (hidden_dim,), dtype=jnp.float32)

    # One-time weight packing (hoisted out of the per-call path).
    w_packed, bh_p, bc_p = prepare_reduce_state_params(wh, bh, wc, bc)
    jax.block_until_ready((w_packed, bh_p, bc_p))

    oh, oc = reduce_state_pallas(h, c, w_packed, bh_p, bc_p)
    jax.block_until_ready((oh, oc))

    # Cross-check against the pure-JAX f32 reference of the PyTorch module.
    # Tolerances loosened vs the pure-f32 variant because weights/activations
    # feed the MXU in bf16 (f32 accumulation).
    ref_h, ref_c = reduce_state_reference(h, c, wh, bh, wc, bc)
    assert oh.shape == (1, batch, hidden_dim) and oc.shape == (1, batch, hidden_dim)
    assert jnp.allclose(oh, ref_h, atol=5e-5, rtol=5e-2), "h mismatch"
    assert jnp.allclose(oc, ref_c, atol=5e-5, rtol=5e-2), "c mismatch"

    print("KERNEL_OK")
</pallas_src>

<mosaic_0001>
module attributes {stable_mosaic.version = 11 : i64} {
  func.func @_reduce_state_kernel(%arg0: memref<2x8x128xf32, #tpu.memory_space<vmem>>, %arg1: memref<2x8x128xf32, #tpu.memory_space<vmem>>, %arg2: memref<256x256xbf16, #tpu.memory_space<vmem>>, %arg3: memref<1x128xf32, #tpu.memory_space<vmem>>, %arg4: memref<1x128xf32, #tpu.memory_space<vmem>>, %arg5: memref<1x8x128xf32, #tpu.memory_space<vmem>>, %arg6: memref<1x8x128xf32, #tpu.memory_space<vmem>>, %arg7: memref<16x256xf32, #tpu.memory_space<vmem>>) attributes {dimension_semantics = [], scalar_prefetch = 0 : i64, scratch_operands = 1 : i64, tpu.core_type = #tpu.core_type<tc>} {
    %c0 = arith.constant 0 : index
    %c0_0 = arith.constant 0 : index
    %c0_1 = arith.constant 0 : index
    %0 = vector.load %arg0[%c0, %c0_0, %c0_1] : memref<2x8x128xf32, #tpu.memory_space<vmem>>, vector<1x8x128xf32>
    %1 = vector.shape_cast %0 : vector<1x8x128xf32> to vector<8x128xf32>
    %c0_2 = arith.constant 0 : index
    %c0_3 = arith.constant 0 : index
    %2 = vector.load %arg7[%c0_2, %c0_3] : memref<16x256xf32, #tpu.memory_space<vmem>>, vector<8x128xf32>
    tpu.vector_store %arg7[%c0_2, %c0_3], %1 {strides = array<i32>} : memref<16x256xf32, #tpu.memory_space<vmem>>, vector<8x128xf32>,
    %c1 = arith.constant 1 : index
    %c0_4 = arith.constant 0 : index
    %c0_5 = arith.constant 0 : index
    %3 = vector.load %arg0[%c1, %c0_4, %c0_5] : memref<2x8x128xf32, #tpu.memory_space<vmem>>, vector<1x8x128xf32>
    %4 = vector.shape_cast %3 : vector<1x8x128xf32> to vector<8x128xf32>
    %c0_6 = arith.constant 0 : index
    %c128 = arith.constant 128 : index
    %5 = vector.load %arg7[%c0_6, %c128] : memref<16x256xf32, #tpu.memory_space<vmem>>, vector<8x128xf32>
    tpu.vector_store %arg7[%c0_6, %c128], %4 {strides = array<i32>} : memref<16x256xf32, #tpu.memory_space<vmem>>, vector<8x128xf32>,
    %c0_7 = arith.constant 0 : index
    %c0_8 = arith.constant 0 : index
    %c0_9 = arith.constant 0 : index
    %6 = vector.load %arg1[%c0_7, %c0_8, %c0_9] : memref<2x8x128xf32, #tpu.memory_space<vmem>>, vector<1x8x128xf32>
    %7 = vector.shape_cast %6 : vector<1x8x128xf32> to vector<8x128xf32>
    %c8 = arith.constant 8 : index
    %c0_10 = arith.constant 0 : index
    %8 = vector.load %arg7[%c8, %c0_10] : memref<16x256xf32, #tpu.memory_space<vmem>>, vector<8x128xf32>
    tpu.vector_store %arg7[%c8, %c0_10], %7 {strides = array<i32>} : memref<16x256xf32, #tpu.memory_space<vmem>>, vector<8x128xf32>,
    %c1_11 = arith.constant 1 : index
    %c0_12 = arith.constant 0 : index
    %c0_13 = arith.constant 0 : index
    %9 = vector.load %arg1[%c1_11, %c0_12, %c0_13] : memref<2x8x128xf32, #tpu.memory_space<vmem>>, vector<1x8x128xf32>
    %10 = vector.shape_cast %9 : vector<1x8x128xf32> to vector<8x128xf32>
    %c8_14 = arith.constant 8 : index
    %c128_15 = arith.constant 128 : index
    %11 = vector.load %arg7[%c8_14, %c128_15] : memref<16x256xf32, #tpu.memory_space<vmem>>, vector<8x128xf32>
    tpu.vector_store %arg7[%c8_14, %c128_15], %10 {strides = array<i32>} : memref<16x256xf32, #tpu.memory_space<vmem>>, vector<8x128xf32>,
    %c0_16 = arith.constant 0 : index
    %c0_17 = arith.constant 0 : index
    %12 = vector.load %arg7[%c0_16, %c0_17] : memref<16x256xf32, #tpu.memory_space<vmem>>, vector<16x256xf32>
    %13 = arith.truncf %12 : vector<16x256xf32> to vector<16x256xbf16>
    %c0_18 = arith.constant 0 : index
    %c0_19 = arith.constant 0 : index
    %14 = vector.load %arg2[%c0_18, %c0_19] : memref<256x256xbf16, #tpu.memory_space<vmem>>, vector<256x256xbf16>
    %cst = arith.constant dense<0.000000e+00> : vector<16x256xf32>
    %15 = tpu.matmul %13, %14, %cst {dimension_numbers = #tpu.dot_dimension_numbers<[1], [0], [0], [1], [0, 0, 1, 1], [], []>} : vector<16x256xbf16>, vector<256x256xbf16>, vector<16x256xf32> -> vector<16x256xf32>
    %16 = vector.extract_strided_slice %15 {offsets = [0, 0], sizes = [8, 128], strides = [1, 1]} : vector<16x256xf32> to vector<8x128xf32>
    %c0_20 = arith.constant 0 : index
    %c0_21 = arith.constant 0 : index
    %17 = vector.load %arg3[%c0_20, %c0_21] : memref<1x128xf32, #tpu.memory_space<vmem>>, vector<1x128xf32>
    %18 = vector.broadcast %17 : vector<1x128xf32> to vector<8x128xf32>
    %19 = arith.addf %16, %18 : vector<8x128xf32>
    %cst_22 = arith.constant 0.000000e+00 : f32
    %20 = vector.broadcast %cst_22 : f32 to vector<8x128xf32>
    %21 = arith.maximumf %19, %20 : vector<8x128xf32>
    %c0_23 = arith.constant 0 : index
    %c0_24 = arith.constant 0 : index
    %c0_25 = arith.constant 0 : index
    %22 = vector.load %arg5[%c0_23, %c0_24, %c0_25] : memref<1x8x128xf32, #tpu.memory_space<vmem>>, vector<1x8x128xf32>
    %23 = vector.shape_cast %22 : vector<1x8x128xf32> to vector<8x128xf32>
    %24 = vector.shape_cast %21 : vector<8x128xf32> to vector<1x8x128xf32>
    tpu.vector_store %arg5[%c0_23, %c0_24, %c0_25], %24 {strides = array<i32>} : memref<1x8x128xf32, #tpu.memory_space<vmem>>, vector<1x8x128xf32>,
    %25 = vector.extract_strided_slice %15 {offsets = [8, 128], sizes = [8, 128], strides = [1, 1]} : vector<16x256xf32> to vector<8x128xf32>
    %c0_26 = arith.constant 0 : index
    %c0_27 = arith.constant 0 : index
    %26 = vector.load %arg4[%c0_26, %c0_27] : memref<1x128xf32, #tpu.memory_space<vmem>>, vector<1x128xf32>
    %27 = vector.broadcast %26 : vector<1x128xf32> to vector<8x128xf32>
    %28 = arith.addf %25, %27 : vector<8x128xf32>
    %cst_28 = arith.constant 0.000000e+00 : f32
    %29 = vector.broadcast %cst_28 : f32 to vector<8x128xf32>
    %30 = arith.maximumf %28, %29 : vector<8x128xf32>
    %c0_29 = arith.constant 0 : index
    %c0_30 = arith.constant 0 : index
    %c0_31 = arith.constant 0 : index
    %31 = vector.load %arg6[%c0_29, %c0_30, %c0_31] : memref<1x8x128xf32, #tpu.memory_space<vmem>>, vector<1x8x128xf32>
    %32 = vector.shape_cast %31 : vector<1x8x128xf32> to vector<8x128xf32>
    %33 = vector.shape_cast %30 : vector<8x128xf32> to vector<1x8x128xf32>
    tpu.vector_store %arg6[%c0_29, %c0_30, %c0_31], %33 {strides = array<i32>} : memref<1x8x128xf32, #tpu.memory_space<vmem>>, vector<1x8x128xf32>,
    return
  }
}

</mosaic_0001>

<llo_original>
// kernel: tpu_custom_call.1
$region0: #{tpu_custom_call.1}
  #allocation0 [shape = 'u32[]', space=smem, size = 0x4, offset = 0x4, fixed_abs, tag = 'smem constant byte address 0x4 - core index']
  #allocation1 [shape = 'u32[144,128]{1,0:T(1,128)}', space=vmem, size = 0x12000, scoped, tag = 'internal scratch']
  #allocation2 [shape = 'f32[16,256]{1,0:T(8,128)}', space=vmem, size = 0x4000, scoped, tag = 'scratch operand']
  %s0 = inlined_call_operand.hbm [shape: f32[2,8,128], index: 0, kind: input, shape index: {}]
  %s1 = inlined_call_operand.hbm [shape: f32[2,8,128], index: 1, kind: input, shape index: {}]
  %s2 = inlined_call_operand.hbm [shape: bf16[256,256], index: 2, kind: input, shape index: {}]
  %s3 = inlined_call_operand.vmem [shape: f32[1,128], index: 3, kind: input, shape index: {}]
  %s4 = inlined_call_operand.vmem [shape: f32[1,128], index: 4, kind: input, shape index: {}]
  %s5 = inlined_call_operand.hbm [shape: f32[1,8,128], index: 5, kind: output, shape index: {0}]
  %s6 = inlined_call_operand.hbm [shape: f32[1,8,128], index: 6, kind: output, shape index: {1}]
  %7 = xla_tuple %s5, %s6
  %s8 = sld [smem:[#allocation0]]
  $region50: #{tpu_custom_call.1} parent=0
    _
  %s10 = ssub.s32 1, %s8
  %s11 = scalar_select 0, %s10, %s8
  $region1: #{tpu_custom_call.1} parent=0
    #allocation3 [shape = 'u8[8192]{0}', space=vmem, size = 0x2000, scoped, tag = 'input window, operand 0, single buffered']
    #allocation4 [shape = 's32[1]{0}', space=sflag, size = 0x4, scoped, tag = 'scoped memory for tpu_custom_call.1']
    #allocation5 [shape = 's32[1]{0}', space=sflag, size = 0x4, scoped, tag = 'scoped memory for tpu_custom_call.1']
    #allocation6 [shape = 'u8[8192]{0}', space=vmem, size = 0x2000, scoped, tag = 'input window, operand 1, single buffered']
    #allocation7 [shape = 's32[1]{0}', space=sflag, size = 0x4, scoped, tag = 'scoped memory for tpu_custom_call.1']
    #allocation8 [shape = 'u8[131072]{0}', space=vmem, size = 0x20000, scoped, tag = 'input window, operand 2, single buffered']
    #allocation9 [shape = 'u8[4096]{0}', space=vmem, size = 0x1000, scoped, tag = 'output window, operand 0, single buffered']
    #allocation10 [shape = 'u8[4096]{0}', space=vmem, size = 0x1000, scoped, tag = 'output window, operand 1, single buffered']
    #allocation11 [shape = 's32[1]{0}', space=sflag, size = 0x4, scoped, tag = 'scoped memory for tpu_custom_call.1']
    %12 = vsyncpa [#allocation4], 0
    %13 = vsyncpa [#allocation7], 0
    %14 = vsyncpa [#allocation5], 0
    %15 = vsyncpa [#allocation11], 0
    // Predicated region
    $region2: #{tpu_custom_call.1} parent=1 // pred_check
      _
    $region3: #{tpu_custom_call.1} parent=1 // pred_check_branch
      %17 = sbr.rel (0) target = $region5
    $region4: #{tpu_custom_call.1} parent=1 // pred_region
      %s19 = ssub.s32 256, 256
      %20 = vsyncadd [#allocation4], %s19
      %s21 = sshll.u32 [#allocation3], 4
      %s22 = int_to_ptr.vmem [resolvable:$true] %s21
      %27 = dma.hbm_to_vmem [thread:$0]  %s0, 256, %s22, [#allocation4], 128, 128, 8
    $region5: #{tpu_custom_call.1} parent=1 // pred_fallthru
      _
    // Predicated region
    $region6: #{tpu_custom_call.1} parent=1 // pred_check
      _
    $region7: #{tpu_custom_call.1} parent=1 // pred_check_branch
      %29 = sbr.rel (0) target = $region9
    $region8: #{tpu_custom_call.1} parent=1 // pred_region
      %s31 = ssub.s32 256, 256
      %32 = vsyncadd [#allocation7], %s31
      %s33 = sshll.u32 [#allocation6], 4
      %s34 = int_to_ptr.vmem [resolvable:$true] %s33
      %39 = dma.hbm_to_vmem [thread:$0]  %s1, 256, %s34, [#allocation7], 128, 128, 8
    $region9: #{tpu_custom_call.1} parent=1 // pred_fallthru
      _
    // Predicated region
    $region10: #{tpu_custom_call.1} parent=1 // pred_check
      _
    $region11: #{tpu_custom_call.1} parent=1 // pred_check_branch
      %41 = sbr.rel (0) target = $region13
    $region12: #{tpu_custom_call.1} parent=1 // pred_region
      %s43 = ssub.s32 4096, 4096
      %44 = vsyncadd [#allocation7], %s43
      %s45 = sshll.u32 [#allocation8], 4
      %s46 = int_to_ptr.vmem [resolvable:$true] %s45
      %51 = dma.hbm_to_vmem [thread:$0]  %s2, 4096, %s46, [#allocation7], 128, 128, 8
    $region13: #{tpu_custom_call.1} parent=1 // pred_fallthru
      _
    // Predicated region
    $region14: #{tpu_custom_call.1} parent=1 // pred_check
      _
    $region15: #{tpu_custom_call.1} parent=1 // pred_check_branch
      %53 = sbr.rel (0) target = $region17
    $region16: #{tpu_custom_call.1} parent=1 // pred_region
      _
    $region17: #{tpu_custom_call.1} parent=1 // pred_fallthru
      _
    // Predicated region
    $region18: #{tpu_custom_call.1} parent=1 // pred_check
      _
    $region19: #{tpu_custom_call.1} parent=1 // pred_check_branch
      %55 = sbr.rel (0) target = $region21
    $region20: #{tpu_custom_call.1} parent=1 // pred_region
      _
    $region21: #{tpu_custom_call.1} parent=1 // pred_fallthru
      _
    // Predicated region
    $region22: #{tpu_custom_call.1} parent=1 // pred_check
      _
    $region23: #{tpu_custom_call.1} parent=1 // pred_check_branch
      %57 = sbr.rel (0) target = $region25
    $region24: #{tpu_custom_call.1} parent=1 // pred_region
      %58 = dma.done [#allocation4], 256
    $region25: #{tpu_custom_call.1} parent=1 // pred_fallthru
      _
    // Predicated region
    $region26: #{tpu_custom_call.1} parent=1 // pred_check
      _
    $region27: #{tpu_custom_call.1} parent=1 // pred_check_branch
      %60 = sbr.rel (0) target = $region29
    $region28: #{tpu_custom_call.1} parent=1 // pred_region
      %61 = dma.done [#allocation7], 256
    $region29: #{tpu_custom_call.1} parent=1 // pred_fallthru
      _
    // Predicated region
    $region30: #{tpu_custom_call.1} parent=1 // pred_check
      _
    $region31: #{tpu_custom_call.1} parent=1 // pred_check_branch
      %63 = sbr.rel (0) target = $region33
    $region32: #{tpu_custom_call.1} parent=1 // pred_region
      %64 = dma.done [#allocation7], 4096
    $region33: #{tpu_custom_call.1} parent=1 // pred_fallthru
      _
    %v65 = vld [vmem:[#allocation3] sm:$0xff]
    %66 = vst [vmem:[#allocation2] sm:$0xff] %v65
    %s67 = scalar_lea.vmem [#allocation3], 8
    %v68 = vld [vmem:[%s67] sm:$0xff]
    %69 = vst [vmem:[#allocation2 + $0x8] sm:$0xff] %v68
    %v70 = vld [vmem:[#allocation6] sm:$0xff]
    %71 = vst [vmem:[#allocation2 + $0x10] sm:$0xff] %v70
    %s72 = scalar_lea.vmem [#allocation6], 8
    %v73 = vld [vmem:[%s72] sm:$0xff]
    %74 = vst [vmem:[#allocation2 + $0x18] sm:$0xff] %v73
    %v75 = vld [vmem:[#allocation2] sm:$0xff]
    %v76 = vld [vmem:[#allocation2 + $0x8] sm:$0xff]
    %v77 = vld [vmem:[#allocation2 + $0x10] sm:$0xff]
    %v78 = vld [vmem:[#allocation2 + $0x18] sm:$0xff]
    %v79 = vpack.c.bf16 %v77, %v75
    %v80 = vpack.c.bf16 %v78, %v76
    %v81 = vld [vmem:[#allocation8] sm:$0xff]
    %v82 = vld [vmem:[#allocation8 + $0x8] sm:$0xff]
    %v83 = vld [vmem:[#allocation8 + $0x10] sm:$0xff]
    %v84 = vld [vmem:[#allocation8 + $0x18] sm:$0xff]
    %v85 = vld [vmem:[#allocation8 + $0x20] sm:$0xff]
    %v86 = vld [vmem:[#allocation8 + $0x28] sm:$0xff]
    %v87 = vld [vmem:[#allocation8 + $0x30] sm:$0xff]
    %v88 = vld [vmem:[#allocation8 + $0x38] sm:$0xff]
    %v89 = vld [vmem:[#allocation8 + $0x40] sm:$0xff]
    %v90 = vld [vmem:[#allocation8 + $0x48] sm:$0xff]
    %v91 = vld [vmem:[#allocation8 + $0x50] sm:$0xff]
    %v92 = vld [vmem:[#allocation8 + $0x58] sm:$0xff]
    %v93 = vld [vmem:[#allocation8 + $0x60] sm:$0xff]
    %v94 = vld [vmem:[#allocation8 + $0x68] sm:$0xff]
    %v95 = vld [vmem:[#allocation8 + $0x70] sm:$0xff]
    %v96 = vld [vmem:[#allocation8 + $0x78] sm:$0xff]
    %v97 = vld [vmem:[#allocation8 + $0x80] sm:$0xff]
    %v98 = vld [vmem:[#allocation8 + $0x88] sm:$0xff]
    %v99 = vld [vmem:[#allocation8 + $0x90] sm:$0xff]
    %v100 = vld [vmem:[#allocation8 + $0x98] sm:$0xff]
    %v101 = vld [vmem:[#allocation8 + $0xa0] sm:$0xff]
    %v102 = vld [vmem:[#allocation8 + $0xa8] sm:$0xff]
    %v103 = vld [vmem:[#allocation8 + $0xb0] sm:$0xff]
    %v104 = vld [vmem:[#allocation8 + $0xb8] sm:$0xff]
    %v105 = vld [vmem:[#allocation8 + $0xc0] sm:$0xff]
    %v106 = vld [vmem:[#allocation8 + $0xc8] sm:$0xff]
    %v107 = vld [vmem:[#allocation8 + $0xd0] sm:$0xff]
    %v108 = vld [vmem:[#allocation8 + $0xd8] sm:$0xff]
    %v109 = vld [vmem:[#allocation8 + $0xe0] sm:$0xff]
    %v110 = vld [vmem:[#allocation8 + $0xe8] sm:$0xff]
    %v111 = vld [vmem:[#allocation8 + $0xf0] sm:$0xff]
    %v112 = vld [vmem:[#allocation8 + $0xf8] sm:$0xff]
    %v145 = vunpack.c.l.b16 %v81
    %v146 = vunpack.c.h.b16 %v81
    %v147 = vunpack.c.l.b16 %v82
    %v148 = vunpack.c.h.b16 %v82
    %v149 = vunpack.c.l.b16 %v83
    %v150 = vunpack.c.h.b16 %v83
    %v151 = vunpack.c.l.b16 %v84
    %v152 = vunpack.c.h.b16 %v84
    %v153 = vunpack.c.l.b16 %v85
    %v154 = vunpack.c.h.b16 %v85
    %v155 = vunpack.c.l.b16 %v86
    %v156 = vunpack.c.h.b16 %v86
    %v157 = vunpack.c.l.b16 %v87
    %v158 = vunpack.c.h.b16 %v87
    %v159 = vunpack.c.l.b16 %v88
    %v160 = vunpack.c.h.b16 %v88
    %v161 = vunpack.c.l.b16 %v89
    %v162 = vunpack.c.h.b16 %v89
    %v163 = vunpack.c.l.b16 %v90
    %v164 = vunpack.c.h.b16 %v90
    %v165 = vunpack.c.l.b16 %v91
    %v166 = vunpack.c.h.b16 %v91
    %v167 = vunpack.c.l.b16 %v92
    %v168 = vunpack.c.h.b16 %v92
    %v169 = vunpack.c.l.b16 %v93
    %v170 = vunpack.c.h.b16 %v93
    %v171 = vunpack.c.l.b16 %v94
    %v172 = vunpack.c.h.b16 %v94
    %v173 = vunpack.c.l.b16 %v95
    %v174 = vunpack.c.h.b16 %v95
    %v175 = vunpack.c.l.b16 %v96
    %v176 = vunpack.c.h.b16 %v96
    %v177 = vunpack.c.l.b16 %v97
    %v178 = vunpack.c.h.b16 %v97
    %v179 = vunpack.c.l.b16 %v98
    %v180 = vunpack.c.h.b16 %v98
    %v181 = vunpack.c.l.b16 %v99
    %v182 = vunpack.c.h.b16 %v99
    %v183 = vunpack.c.l.b16 %v100
    %v184 = vunpack.c.h.b16 %v100
    %v185 = vunpack.c.l.b16 %v101
    %v186 = vunpack.c.h.b16 %v101
    %v187 = vunpack.c.l.b16 %v102
    %v188 = vunpack.c.h.b16 %v102
    %v189 = vunpack.c.l.b16 %v103
    %v190 = vunpack.c.h.b16 %v103
    %v191 = vunpack.c.l.b16 %v104
    %v192 = vunpack.c.h.b16 %v104
    %v193 = vunpack.c.l.b16 %v105
    %v194 = vunpack.c.h.b16 %v105
    %v195 = vunpack.c.l.b16 %v106
    %v196 = vunpack.c.h.b16 %v106
    %v197 = vunpack.c.l.b16 %v107
    %v198 = vunpack.c.h.b16 %v107
    %v199 = vunpack.c.l.b16 %v108
    %v200 = vunpack.c.h.b16 %v108
    %v201 = vunpack.c.l.b16 %v109
    %v202 = vunpack.c.h.b16 %v109
    %v203 = vunpack.c.l.b16 %v110
    %v204 = vunpack.c.h.b16 %v110
    %v205 = vunpack.c.l.b16 %v111
    %v206 = vunpack.c.h.b16 %v111
    %v207 = vunpack.c.l.b16 %v112
    %v208 = vunpack.c.h.b16 %v112
    %v209 = vpack.c.b16 %v147, %v145
    %v210 = vpack.c.b16 %v148, %v146
    %v211 = vpack.c.b16 %v151, %v149
    %v212 = vpack.c.b16 %v152, %v150
    %v213 = vpack.c.b16 %v155, %v153
    %v214 = vpack.c.b16 %v156, %v154
    %v215 = vpack.c.b16 %v159, %v157
    %v216 = vpack.c.b16 %v160, %v158
    %v217 = vpack.c.b16 %v163, %v161
    %v218 = vpack.c.b16 %v164, %v162
    %v219 = vpack.c.b16 %v167, %v165
    %v220 = vpack.c.b16 %v168, %v166
    %v221 = vpack.c.b16 %v171, %v169
    %v222 = vpack.c.b16 %v172, %v170
    %v223 = vpack.c.b16 %v175, %v173
    %v224 = vpack.c.b16 %v176, %v174
    %v225 = vpack.c.b16 %v179, %v177
    %v226 = vpack.c.b16 %v180, %v178
    %v227 = vpack.c.b16 %v183, %v181
    %v228 = vpack.c.b16 %v184, %v182
    %v229 = vpack.c.b16 %v187, %v185
    %v230 = vpack.c.b16 %v188, %v186
    %v231 = vpack.c.b16 %v191, %v189
    %v232 = vpack.c.b16 %v192, %v190
    %v233 = vpack.c.b16 %v195, %v193
    %v234 = vpack.c.b16 %v196, %v194
    %v235 = vpack.c.b16 %v199, %v197
    %v236 = vpack.c.b16 %v200, %v198
    %v237 = vpack.c.b16 %v203, %v201
    %v238 = vpack.c.b16 %v204, %v202
    %v239 = vpack.c.b16 %v207, %v205
    %v240 = vpack.c.b16 %v208, %v206
    %273 = vmatprep.subr.bf16.mxu0 %v210
    %274 = vmatpush1.bf16.msra.mxu0 %v209
    %275 = vmatprep.subr.bf16.mxu0 %v212
    %276 = vmatpush1.bf16.msra.mxu0 %v211
    %277 = vmatprep.subr.bf16.mxu0 %v214
    %278 = vmatpush1.bf16.msra.mxu0 %v213
    %279 = vmatprep.subr.bf16.mxu0 %v216
    %280 = vmatpush1.bf16.msra.mxu0 %v215
    %281 = vmatprep.subr.bf16.mxu0 %v218
    %282 = vmatpush1.bf16.msra.mxu0 %v217
    %283 = vmatprep.subr.bf16.mxu0 %v220
    %284 = vmatpush1.bf16.msra.mxu0 %v219
    %285 = vmatprep.subr.bf16.mxu0 %v222
    %286 = vmatpush1.bf16.msra.mxu0 %v221
    %287 = vmatprep.subr.bf16.mxu0 %v224
    %288 = vmatpush1.bf16.msra.mxu0 %v223
    %289 = vmatprep.subr.bf16.mxu0 %v226
    %290 = vmatpush1.bf16.msra.mxu0 %v225
    %291 = vmatprep.subr.bf16.mxu0 %v228
    %292 = vmatpush1.bf16.msra.mxu0 %v227
    %293 = vmatprep.subr.bf16.mxu0 %v230
    %294 = vmatpush1.bf16.msra.mxu0 %v229
    %295 = vmatprep.subr.bf16.mxu0 %v232
    %296 = vmatpush1.bf16.msra.mxu0 %v231
    %297 = vmatprep.subr.bf16.mxu0 %v234
    %298 = vmatpush1.bf16.msra.mxu0 %v233
    %299 = vmatprep.subr.bf16.mxu0 %v236
    %300 = vmatpush1.bf16.msra.mxu0 %v235
    %301 = vmatprep.subr.bf16.mxu0 %v238
    %302 = vmatpush1.bf16.msra.mxu0 %v237
    %303 = vmatprep.subr.bf16.mxu0 %v240
    %304 = vmatpush1.bf16.msra.mxu0 %v239
    %305 = vmatprep.mubr.bf16.mxu0 %v80
    %306 = vmatmul.mubr.bf16.gmra.mrb[0].mxu0 %v79
    %v307 = vpop.f32.mrb[0].mxu0
    %v308 = vadd.f32 0.0, %v307
    %v309 = vpop.f32.mrb[0].mxu0
    %v310 = vpop.f32.mrb[0].mxu0
    %v311 = vpop.f32.mrb[0].mxu0
    %v312 = vadd.f32 0.0, %v311
    %313 = vdwg.mxu0
    %v314 = vld [vmem:[%s3] sm:$0x1]
    %v316 = vlaneseq
    %v317 = vshrl.u32 %v316, 7
    %v318 = vsub.s32 0, %v317
    %v319 = vrot.slane %v314, %v318
    %v321 = vadd.f32 %v308, %v319
    %v322 = vmax.f32 %v321, 0.0
    %323 = vst [vmem:[#allocation9] sm:$0xff] %v322
    %v324 = vld [vmem:[%s4] sm:$0x1]
    %v326 = vlaneseq
    %v327 = vshrl.u32 %v326, 7
    %v328 = vsub.s32 0, %v327
    %v329 = vrot.slane %v324, %v328
    %v331 = vadd.f32 %v312, %v329
    %v332 = vmax.f32 %v331, 0.0
    %333 = vst [vmem:[#allocation10] sm:$0xff] %v332
    // Predicated region
    $region34: #{tpu_custom_call.1} parent=1 // pred_check
      _
    $region35: #{tpu_custom_call.1} parent=1 // pred_check_branch
      %335 = sbr.rel (0) target = $region37
    $region36: #{tpu_custom_call.1} parent=1 // pred_region
      %s337 = ssub.s32 128, 128
      %338 = vsyncadd [#allocation5], %s337
      %s340 = sshll.u32 [#allocation9], 4
      %s341 = int_to_ptr.vmem [resolvable:$true] %s340
      %343 = dma.vmem_to_hbm [thread:$0]  %s341, 128, %s5, [#allocation5]
    $region37: #{tpu_custom_call.1} parent=1 // pred_fallthru
      _
    // Predicated region
    $region38: #{tpu_custom_call.1} parent=1 // pred_check
      _
    $region39: #{tpu_custom_call.1} parent=1 // pred_check_branch
      %345 = sbr.rel (0) target = $region41
    $region40: #{tpu_custom_call.1} parent=1 // pred_region
      %s347 = ssub.s32 128, 128
      %348 = vsyncadd [#allocation11], %s347
      %s350 = sshll.u32 [#allocation10], 4
      %s351 = int_to_ptr.vmem [resolvable:$true] %s350
      %353 = dma.vmem_to_hbm [thread:$0]  %s351, 128, %s6, [#allocation11]
    $region41: #{tpu_custom_call.1} parent=1 // pred_fallthru
      _
    // Predicated region
    $region42: #{tpu_custom_call.1} parent=1 // pred_check
      _
    $region43: #{tpu_custom_call.1} parent=1 // pred_check_branch
      %355 = sbr.rel (0) target = $region45
    $region44: #{tpu_custom_call.1} parent=1 // pred_region
      %356 = dma.done [#allocation5], 128
    $region45: #{tpu_custom_call.1} parent=1 // pred_fallthru
      _
    // Predicated region
    $region46: #{tpu_custom_call.1} parent=1 // pred_check
      _
    $region47: #{tpu_custom_call.1} parent=1 // pred_check_branch
      %358 = sbr.rel (0) target = $region49
    $region48: #{tpu_custom_call.1} parent=1 // pred_region
      %359 = dma.done [#allocation11], 128
    $region49: #{tpu_custom_call.1} parent=1 // pred_fallthru
      _
    %360 = vsyncpa [#allocation4], 1
    %361 = vsyncpa [#allocation7], 1
    %362 = vsyncpa [#allocation5], 1
    %363 = vsyncpa [#allocation11], 1

</llo_original>
